<compile_context>
chip_gen: v7x
topology: tpu7x:2x2x1
jax: 0.10.0
libtpu: 0.0.40
codegen_flags: <defaults>
</compile_context>

<pallas_src>
import jax
import jax.numpy as jnp
from jax.experimental import pallas as pl


def additive_attention_kernel(q_ref, k_ref, vT_ref, w_ref, valid_ref, o_ref):
    # q_ref: (B, Q, Dq)   k_ref: (B, K, Dk)   vT_ref: (B, Dv, K)
    # w_ref: (Dq+Dk+1, H) packed [W_q^T ; W_k^T ; w_v]   valid_ref: (B, 1, 1) int32
    # o_ref: (B, Q, Dv)
    B, Q, Dq = q_ref.shape
    _, K, Dk = k_ref.shape

    w = w_ref[...]                                   # (Dq+Dk+1, H), staged once
    q = q_ref[...]
    k = k_ref[...]

    # Projections W_q(queries), W_k(keys): contraction dim is tiny (Dq=Dk=2), so unroll
    # it on the VPU (broadcast-multiply + add). No MXU issue, no weight broadcast over
    # the batch dimension.
    qp = q[:, :, 0:1] * w[0:1, :]                    # (B, Q, 1) * (1, H) -> (B, Q, H)
    for d in range(1, Dq):
        qp = qp + q[:, :, d:d + 1] * w[d:d + 1, :]
    kp = k[:, :, 0:1] * w[Dq:Dq + 1, :]              # (B, K, H)
    for d in range(1, Dk):
        kp = kp + k[:, :, d:d + 1] * w[Dq + d:Dq + d + 1, :]

    # features = tanh(queries.unsqueeze(2) + keys.unsqueeze(1)) -> (B, Q, K, H)
    features = jnp.tanh(qp[:, :, None, :] + kp[:, None, :, :])

    # scores = w_v(features).squeeze(-1) -> (B, Q, K).  H=8 lane reduce on the VPU/XLU.
    # TODO(synk): at scaled K*H, re-layout so K is the lane axis (and contract H on the
    # MXU) to keep the EUP at full lane occupancy.
    wv = w[Dq + Dk:Dq + Dk + 1, :]                   # (1, H)
    scores = jnp.sum(features * wv, axis=-1)         # (B, Q, K)

    # masked_softmax along the key axis (1-D per-batch valid_lens), exact normalization.
    col = jax.lax.broadcasted_iota(jnp.int32, (B, Q, K), 2)
    masked = jnp.where(col < valid_ref[...], scores, jnp.float32(-1e6))
    m = jnp.max(masked, axis=-1, keepdims=True)
    e = jnp.exp(masked - m)
    attn = e / jnp.sum(e, axis=-1, keepdims=True)    # (B, Q, K)

    # TODO(synk): nn.Dropout omitted (module evaluated in eval mode -> identity).

    # bmm(attention_weights, values): values pre-transposed wrapper-side to (B, Dv, K)
    # so the K-contraction is a lane-axis reduce on the VPU (no MXU at these widths).
    out = jnp.sum(attn[:, :, None, :] * vT_ref[...][:, None, :, :], axis=-1)
    o_ref[...] = out.astype(o_ref.dtype)             # (B, Q, Dv)


def additive_attention(queries, keys, values, valid_lens, W_q, W_k, w_v):
    B, Q, Dq = queries.shape
    _, K, Dk = keys.shape
    Dv = values.shape[-1]

    # Wrapper-side (free) layout plumbing:
    #   * pack the three projection weights into one array -> one input DMA,
    #   * pre-transpose them to (in, out) so the kernel indexes rows by input feature,
    #   * transpose values to (B, Dv, K) so the final contraction reduces over lanes,
    #   * reshape valid_lens so the mask is a pure vectorized compare.
    w_packed = jnp.concatenate([W_q.T, W_k.T, w_v], axis=0)      # (Dq+Dk+1, H)
    valuesT = jnp.swapaxes(values, 1, 2)                         # (B, Dv, K)
    valid = valid_lens.astype(jnp.int32).reshape(B, 1, 1)

    # Gridless call: whole problem fits VMEM on every TPU generation, so skip the
    # software pipeline entirely (no grid, whole-array default specs).
    return pl.pallas_call(
        additive_attention_kernel,
        out_shape=jax.ShapeDtypeStruct((B, Q, Dv), jnp.float32),
    )(queries, keys, valuesT, w_packed, valid)


def reference(queries, keys, values, valid_lens, W_q, W_k, w_v):
    qp = jnp.einsum('bqd,hd->bqh', queries, W_q)
    kp = jnp.einsum('bkd,hd->bkh', keys, W_k)
    features = jnp.tanh(qp[:, :, None, :] + kp[:, None, :, :])
    scores = jnp.einsum('bqkh,h->bqk', features, w_v[0])
    K = scores.shape[-1]
    mask = jnp.arange(K)[None, None, :] < valid_lens[:, None, None]
    masked = jnp.where(mask, scores, -1e6)
    attn = jax.nn.softmax(masked, axis=-1)
    return jnp.einsum('bqk,bkv->bqv', attn, values)


if __name__ == "__main__":
    # Shapes implied by the module usage: queries (2,1,2), keys (2,10,2),
    # values (2,10,4), valid_lens (2,), num_hiddens=8.
    B, Q, K = 2, 1, 10
    Dq, Dk, Dv, H = 2, 2, 4, 8

    key = jax.random.PRNGKey(0)
    kq, kwq, kwk, kwv = jax.random.split(key, 4)

    queries = jax.random.normal(kq, (B, Q, Dq), dtype=jnp.float32)
    keys = jnp.ones((B, K, Dk), dtype=jnp.float32)
    values = jnp.tile(
        jnp.arange(K * Dv, dtype=jnp.float32).reshape(1, K, Dv), (B, 1, 1))
    valid_lens = jnp.array([2, 6], dtype=jnp.int32)

    # Deterministic parameter init (PyTorch Linear-style uniform bound).
    def init_linear(rng, out_f, in_f):
        bound = 1.0 / jnp.sqrt(jnp.float32(in_f))
        return jax.random.uniform(rng, (out_f, in_f), jnp.float32, -bound, bound)

    W_q = init_linear(kwq, H, Dq)   # (num_hiddens, query_size)
    W_k = init_linear(kwk, H, Dk)   # (num_hiddens, key_size)
    w_v = init_linear(kwv, 1, H)    # (1, num_hiddens)

    out = additive_attention(queries, keys, values, valid_lens, W_q, W_k, w_v)
    out = jax.block_until_ready(out)

    ref = reference(queries, keys, values, valid_lens, W_q, W_k, w_v)
    assert out.shape == (B, Q, Dv)
    # Exact softmax normalization now -> tight tolerance (only transcendental rounding).
    assert jnp.allclose(out, ref, rtol=1e-4, atol=1e-5), (out, ref)

    print("KERNEL_OK")
</pallas_src>

<mosaic_0001>
module attributes {stable_mosaic.version = 11 : i64} {
  func.func @additive_attention_kernel(%arg0: memref<2x1x2xf32, #tpu.memory_space<vmem>>, %arg1: memref<2x10x2xf32, #tpu.memory_space<vmem>>, %arg2: memref<2x4x10xf32, #tpu.memory_space<vmem>>, %arg3: memref<5x8xf32, #tpu.memory_space<vmem>>, %arg4: memref<2x1x1xi32, #tpu.memory_space<vmem>>, %arg5: memref<2x1x4xf32, #tpu.memory_space<vmem>>) attributes {dimension_semantics = [], scalar_prefetch = 0 : i64, scratch_operands = 0 : i64, tpu.core_type = #tpu.core_type<tc>} {
    %c0 = arith.constant 0 : index
    %c0_0 = arith.constant 0 : index
    %0 = vector.load %arg3[%c0, %c0_0] : memref<5x8xf32, #tpu.memory_space<vmem>>, vector<5x8xf32>
    %c0_1 = arith.constant 0 : index
    %c0_2 = arith.constant 0 : index
    %c0_3 = arith.constant 0 : index
    %1 = vector.load %arg0[%c0_1, %c0_2, %c0_3] : memref<2x1x2xf32, #tpu.memory_space<vmem>>, vector<2x1x2xf32>
    %c0_4 = arith.constant 0 : index
    %c0_5 = arith.constant 0 : index
    %c0_6 = arith.constant 0 : index
    %2 = vector.load %arg1[%c0_4, %c0_5, %c0_6] : memref<2x10x2xf32, #tpu.memory_space<vmem>>, vector<2x10x2xf32>
    %3 = vector.extract_strided_slice %1 {offsets = [0, 0, 0], sizes = [2, 1, 1], strides = [1, 1, 1]} : vector<2x1x2xf32> to vector<2x1x1xf32>
    %4 = vector.extract_strided_slice %0 {offsets = [0, 0], sizes = [1, 8], strides = [1, 1]} : vector<5x8xf32> to vector<1x8xf32>
    %5 = vector.shape_cast %4 : vector<1x8xf32> to vector<1x1x8xf32>
    %6 = vector.broadcast %3 : vector<2x1x1xf32> to vector<2x1x8xf32>
    %7 = vector.broadcast %5 : vector<1x1x8xf32> to vector<2x1x8xf32>
    %8 = arith.mulf %6, %7 : vector<2x1x8xf32>
    %9 = vector.extract_strided_slice %1 {offsets = [0, 0, 1], sizes = [2, 1, 1], strides = [1, 1, 1]} : vector<2x1x2xf32> to vector<2x1x1xf32>
    %10 = vector.extract_strided_slice %0 {offsets = [1, 0], sizes = [1, 8], strides = [1, 1]} : vector<5x8xf32> to vector<1x8xf32>
    %11 = vector.shape_cast %10 : vector<1x8xf32> to vector<1x1x8xf32>
    %12 = vector.broadcast %9 : vector<2x1x1xf32> to vector<2x1x8xf32>
    %13 = vector.broadcast %11 : vector<1x1x8xf32> to vector<2x1x8xf32>
    %14 = arith.mulf %12, %13 : vector<2x1x8xf32>
    %15 = arith.addf %8, %14 : vector<2x1x8xf32>
    %16 = vector.extract_strided_slice %2 {offsets = [0, 0, 0], sizes = [2, 10, 1], strides = [1, 1, 1]} : vector<2x10x2xf32> to vector<2x10x1xf32>
    %17 = vector.extract_strided_slice %0 {offsets = [2, 0], sizes = [1, 8], strides = [1, 1]} : vector<5x8xf32> to vector<1x8xf32>
    %18 = vector.shape_cast %17 : vector<1x8xf32> to vector<1x1x8xf32>
    %19 = vector.broadcast %16 : vector<2x10x1xf32> to vector<2x10x8xf32>
    %20 = vector.broadcast %18 : vector<1x1x8xf32> to vector<2x10x8xf32>
    %21 = arith.mulf %19, %20 : vector<2x10x8xf32>
    %22 = vector.extract_strided_slice %2 {offsets = [0, 0, 1], sizes = [2, 10, 1], strides = [1, 1, 1]} : vector<2x10x2xf32> to vector<2x10x1xf32>
    %23 = vector.extract_strided_slice %0 {offsets = [3, 0], sizes = [1, 8], strides = [1, 1]} : vector<5x8xf32> to vector<1x8xf32>
    %24 = vector.shape_cast %23 : vector<1x8xf32> to vector<1x1x8xf32>
    %25 = vector.broadcast %22 : vector<2x10x1xf32> to vector<2x10x8xf32>
    %26 = vector.broadcast %24 : vector<1x1x8xf32> to vector<2x10x8xf32>
    %27 = arith.mulf %25, %26 : vector<2x10x8xf32>
    %28 = arith.addf %21, %27 : vector<2x10x8xf32>
    %29 = vector.shape_cast %15 : vector<2x1x8xf32> to vector<2x1x1x8xf32>
    %30 = vector.shape_cast %28 : vector<2x10x8xf32> to vector<2x1x10x8xf32>
    %31 = vector.broadcast %29 : vector<2x1x1x8xf32> to vector<2x1x10x8xf32>
    %32 = arith.addf %31, %30 : vector<2x1x10x8xf32>
    %33 = math.tanh %32 : vector<2x1x10x8xf32>
    %34 = vector.extract_strided_slice %0 {offsets = [4, 0], sizes = [1, 8], strides = [1, 1]} : vector<5x8xf32> to vector<1x8xf32>
    %35 = vector.shape_cast %34 : vector<1x8xf32> to vector<1x1x1x8xf32>
    %36 = vector.broadcast %35 : vector<1x1x1x8xf32> to vector<2x1x10x8xf32>
    %37 = arith.mulf %33, %36 : vector<2x1x10x8xf32>
    %cst = arith.constant dense<0.000000e+00> : vector<2x1x10xf32>
    %38 = vector.multi_reduction <add>, %37, %cst [3] : vector<2x1x10x8xf32> to vector<2x1x10xf32>
    %39 = tpu.iota {dimensions = array<i32: 2>} : vector<2x1x10xi32>
    %c0_7 = arith.constant 0 : index
    %c0_8 = arith.constant 0 : index
    %c0_9 = arith.constant 0 : index
    %40 = vector.load %arg4[%c0_7, %c0_8, %c0_9] : memref<2x1x1xi32, #tpu.memory_space<vmem>>, vector<2x1x1xi32>
    %41 = vector.broadcast %40 : vector<2x1x1xi32> to vector<2x1x10xi32>
    %42 = arith.cmpi slt, %39, %41 : vector<2x1x10xi32>
    %cst_10 = arith.constant -1.000000e+06 : f32
    %43 = vector.broadcast %cst_10 : f32 to vector<2x1x10xf32>
    %44 = arith.select %42, %38, %43 : vector<2x1x10xi1>, vector<2x1x10xf32>
    %cst_11 = arith.constant dense<0xFF800000> : vector<2x1xf32>
    %45 = vector.multi_reduction <maximumf>, %44, %cst_11 [2] : vector<2x1x10xf32> to vector<2x1xf32>
    %46 = vector.shape_cast %45 : vector<2x1xf32> to vector<2x1x1xf32>
    %47 = vector.broadcast %46 : vector<2x1x1xf32> to vector<2x1x10xf32>
    %48 = arith.subf %44, %47 : vector<2x1x10xf32>
    %49 = math.exp %48 : vector<2x1x10xf32>
    %cst_12 = arith.constant dense<0.000000e+00> : vector<2x1xf32>
    %50 = vector.multi_reduction <add>, %49, %cst_12 [2] : vector<2x1x10xf32> to vector<2x1xf32>
    %51 = vector.shape_cast %50 : vector<2x1xf32> to vector<2x1x1xf32>
    %52 = vector.broadcast %51 : vector<2x1x1xf32> to vector<2x1x10xf32>
    %53 = arith.divf %49, %52 : vector<2x1x10xf32>
    %54 = vector.shape_cast %53 : vector<2x1x10xf32> to vector<2x1x1x10xf32>
    %c0_13 = arith.constant 0 : index
    %c0_14 = arith.constant 0 : index
    %c0_15 = arith.constant 0 : index
    %55 = vector.load %arg2[%c0_13, %c0_14, %c0_15] : memref<2x4x10xf32, #tpu.memory_space<vmem>>, vector<2x4x10xf32>
    %56 = vector.shape_cast %55 : vector<2x4x10xf32> to vector<2x1x4x10xf32>
    %57 = vector.broadcast %54 : vector<2x1x1x10xf32> to vector<2x1x4x10xf32>
    %58 = arith.mulf %57, %56 : vector<2x1x4x10xf32>
    %cst_16 = arith.constant dense<0.000000e+00> : vector<2x1x4xf32>
    %59 = vector.multi_reduction <add>, %58, %cst_16 [3] : vector<2x1x4x10xf32> to vector<2x1x4xf32>
    %c0_17 = arith.constant 0 : index
    %c0_18 = arith.constant 0 : index
    %c0_19 = arith.constant 0 : index
    %60 = vector.load %arg5[%c0_17, %c0_18, %c0_19] : memref<2x1x4xf32, #tpu.memory_space<vmem>>, vector<2x1x4xf32>
    tpu.vector_store %arg5[%c0_17, %c0_18, %c0_19], %59 {strides = array<i32>} : memref<2x1x4xf32, #tpu.memory_space<vmem>>, vector<2x1x4xf32>,
    return
  }
}

</mosaic_0001>

<llo_original>
// kernel: tpu_custom_call.1
$region0: #{tpu_custom_call.1}
  #allocation0 [shape = 'u32[]', space=smem, size = 0x4, offset = 0x4, fixed_abs, tag = 'smem constant byte address 0x4 - core index']
  #allocation1 [shape = 'u32[144,128]{1,0:T(1,128)}', space=vmem, size = 0x12000, scoped, tag = 'internal scratch']
  %s0 = inlined_call_operand.vmem [shape: f32[2,1,2], index: 0, kind: input, shape index: {}]
  %s1 = inlined_call_operand.vmem [shape: f32[2,10,2], index: 1, kind: input, shape index: {}]
  %s2 = inlined_call_operand.vmem [shape: f32[2,4,10], index: 2, kind: input, shape index: {}]
  %s3 = inlined_call_operand.vmem [shape: f32[5,8], index: 3, kind: input, shape index: {}]
  %s4 = inlined_call_operand.vmem [shape: s32[2,1,1], index: 4, kind: input, shape index: {}]
  %s5 = inlined_call_operand.hbm [shape: f32[2,1,4], index: 5, kind: output, shape index: {}]
  %s6 = sld [smem:[#allocation0]]
  $region30: #{tpu_custom_call.1} parent=0
    _
  %s8 = ssub.s32 1, %s6
  %s9 = scalar_select 0, %s8, %s6
  $region1: #{tpu_custom_call.1} parent=0
    #allocation2 [shape = 'u8[1024]{0}', space=vmem, size = 0x400, scoped, tag = 'output window, operand 0, single buffered']
    #allocation3 [shape = 's32[1]{0}', space=sflag, size = 0x4, scoped, tag = 'scoped memory for tpu_custom_call.1']
    %10 = vsyncpa [#allocation3], 0
    // Predicated region
    $region2: #{tpu_custom_call.1} parent=1 // pred_check
      _
    $region3: #{tpu_custom_call.1} parent=1 // pred_check_branch
      %12 = sbr.rel (0) target = $region5
    $region4: #{tpu_custom_call.1} parent=1 // pred_region
      _
    $region5: #{tpu_custom_call.1} parent=1 // pred_fallthru
      _
    // Predicated region
    $region6: #{tpu_custom_call.1} parent=1 // pred_check
      _
    $region7: #{tpu_custom_call.1} parent=1 // pred_check_branch
      %14 = sbr.rel (0) target = $region9
    $region8: #{tpu_custom_call.1} parent=1 // pred_region
      _
    $region9: #{tpu_custom_call.1} parent=1 // pred_fallthru
      _
    // Predicated region
    $region10: #{tpu_custom_call.1} parent=1 // pred_check
      _
    $region11: #{tpu_custom_call.1} parent=1 // pred_check_branch
      %16 = sbr.rel (0) target = $region13
    $region12: #{tpu_custom_call.1} parent=1 // pred_region
      _
    $region13: #{tpu_custom_call.1} parent=1 // pred_fallthru
      _
    // Predicated region
    $region14: #{tpu_custom_call.1} parent=1 // pred_check
      _
    $region15: #{tpu_custom_call.1} parent=1 // pred_check_branch
      %18 = sbr.rel (0) target = $region17
    $region16: #{tpu_custom_call.1} parent=1 // pred_region
      _
    $region17: #{tpu_custom_call.1} parent=1 // pred_fallthru
      _
    // Predicated region
    $region18: #{tpu_custom_call.1} parent=1 // pred_check
      _
    $region19: #{tpu_custom_call.1} parent=1 // pred_check_branch
      %20 = sbr.rel (0) target = $region21
    $region20: #{tpu_custom_call.1} parent=1 // pred_region
      _
    $region21: #{tpu_custom_call.1} parent=1 // pred_fallthru
      _
    %v21 = vld [vmem:[%s3] sm:$0x1f]
    %v22 = vld [vmem:[%s0] sm:$0x1]
    %v23 = vld [vmem:[%s0 + $0x1] sm:$0x1]
    %v24 = vld [vmem:[%s1] sm:$0xff]
    %v25 = vld [vmem:[%s1 + $0x8] sm:$0x3]
    %v26 = vld [vmem:[%s1 + $0x10] sm:$0xff]
    %v27 = vld [vmem:[%s1 + $0x18] sm:$0x3]
    %29 = vset.pattern.permute.xlu0 0
    %30 = vperm.xlu0 %29, %v22
    %v31 = vpop.permute.xlu0 %30
    %v33 = vlaneseq
    %v34 = vshrl.u32 %v33, 7
    %v35 = vsub.s32 0, %v34
    %v36 = vrot.slane %v31, %v35
    %38 = vset.pattern.permute.xlu0 0
    %39 = vperm.xlu0 %38, %v23
    %v40 = vpop.permute.xlu0 %39
    %v42 = vlaneseq
    %v43 = vshrl.u32 %v42, 7
    %v44 = vsub.s32 0, %v43
    %v45 = vrot.slane %v40, %v44
    %v46 = vmul.f32 %v36, %v21
    %v47 = vmul.f32 %v45, %v21
    %48 = vset.pattern.permute.xlu0 1
    %49 = vperm.xlu0 %48, %v22
    %v50 = vpop.permute.xlu0 %49
    %v52 = vlaneseq
    %v53 = vshrl.u32 %v52, 7
    %v54 = vsub.s32 0, %v53
    %v55 = vrot.slane %v50, %v54
    %56 = vset.pattern.permute.xlu0 1
    %57 = vperm.xlu0 %56, %v23
    %v58 = vpop.permute.xlu0 %57
    %v60 = vlaneseq
    %v61 = vshrl.u32 %v60, 7
    %v62 = vsub.s32 0, %v61
    %v63 = vrot.slane %v58, %v62
    %v64 = vmul.f32 %v55, %v21
    %v65 = vmul.f32 %v63, %v21
    %v68 = vrot.slane %v64, 1
    %v69 = vrot.slane %v65, 1
    %v72 = vadd.f32 %v46, %v68
    %v73 = vadd.f32 %v47, %v69
    %75 = vset.pattern.permute.xlu0 0
    %76 = vperm.xlu0 %75, %v24
    %v77 = vpop.permute.xlu0 %76
    %80 = vset.pattern.permute.xlu0 0
    %81 = vperm.xlu0 %80, %v25
    %v82 = vpop.permute.xlu0 %81
    %85 = vset.pattern.permute.xlu0 0
    %86 = vperm.xlu0 %85, %v26
    %v87 = vpop.permute.xlu0 %86
    %90 = vset.pattern.permute.xlu0 0
    %91 = vperm.xlu0 %90, %v27
    %v92 = vpop.permute.xlu0 %91
    %v94 = vlaneseq
    %v95 = vshrl.u32 %v94, 7
    %v96 = vsub.s32 2, %v95
    %v97 = vrot.slane %v21, %v96
    %v98 = vmul.f32 %v77, %v97
    %v99 = vmul.f32 %v82, %v97
    %v100 = vmul.f32 %v87, %v97
    %v101 = vmul.f32 %v92, %v97
    %102 = vset.pattern.permute.xlu0 1
    %103 = vperm.xlu0 %102, %v24
    %v104 = vpop.permute.xlu0 %103
    %106 = vset.pattern.permute.xlu0 1
    %107 = vperm.xlu0 %106, %v25
    %v108 = vpop.permute.xlu0 %107
    %110 = vset.pattern.permute.xlu0 1
    %111 = vperm.xlu0 %110, %v26
    %v112 = vpop.permute.xlu0 %111
    %114 = vset.pattern.permute.xlu0 1
    %115 = vperm.xlu0 %114, %v27
    %v116 = vpop.permute.xlu0 %115
    %v118 = vlaneseq
    %v119 = vshrl.u32 %v118, 7
    %v120 = vsub.s32 3, %v119
    %v121 = vrot.slane %v21, %v120
    %v122 = vmul.f32 %v104, %v121
    %v123 = vmul.f32 %v108, %v121
    %v124 = vmul.f32 %v112, %v121
    %v125 = vmul.f32 %v116, %v121
    %v126 = vadd.f32 %v98, %v122
    %v127 = vadd.f32 %v99, %v123
    %v128 = vadd.f32 %v100, %v124
    %v129 = vadd.f32 %v101, %v125
    %v130 = vlaneseq
    %v131 = vshrl.u32 %v130, 7
    %v132 = vsub.s32 0, %v131
    %v133 = vrot.slane %v72, %v132
    %v134 = vlaneseq
    %v135 = vshrl.u32 %v134, 7
    %v136 = vsub.s32 0, %v135
    %v137 = vrot.slane %v73, %v136
    %v138 = vadd.f32 %v133, %v126
    %v139 = vadd.f32 %v133, %v127
    %v140 = vadd.f32 %v137, %v128
    %v141 = vadd.f32 %v137, %v129
    %v142 = vtanh.pop %v138
    %v143 = vtanh.pop %v139
    %v144 = vtanh.pop %v140
    %v145 = vtanh.pop %v141
    %v146 = vlaneseq
    %v147 = vshrl.u32 %v146, 7
    %v148 = vsub.s32 4, %v147
    %v149 = vrot.slane %v21, %v148
    %v150 = vmul.f32 %v142, %v149
    %v151 = vmul.f32 %v143, %v149
    %v152 = vmul.f32 %v144, %v149
    %v153 = vmul.f32 %v145, %v149
    %vm154 = vcmask 64512
    %v155 = vsel %vm154, %v150, 0.0
    %156 = vadd.xlane.f32.xlu0 %v155
    %v157 = vpop.xlane.xlu0 %156
    %vm158 = vcmask 58368
    %v159 = vsel %vm158, %v151, 0.0
    %160 = vadd.xlane.f32.xlu0 %v159
    %v161 = vpop.xlane.xlu0 %160
    %v162 = vsel %vm154, %v152, 0.0
    %163 = vadd.xlane.f32.xlu0 %v162
    %v164 = vpop.xlane.xlu0 %163
    %v165 = vsel %vm158, %v153, 0.0
    %166 = vadd.xlane.f32.xlu0 %v165
    %v167 = vpop.xlane.xlu0 %166
    %v168 = vlaneseq
    %v169 = vand.u32 %v168, 127
    %v170 = vld [vmem:[%s4] sm:$0x1]
    %v171 = vld [vmem:[%s4 + $0x1] sm:$0x1]
    %172 = vset.pattern.permute.xlu0 0
    %173 = vperm.xlu0 %172, %v170
    %v174 = vpop.permute.xlu0 %173
    %v175 = vlaneseq
    %v176 = vshrl.u32 %v175, 7
    %v177 = vsub.s32 0, %v176
    %v178 = vrot.slane %v174, %v177
    %179 = vset.pattern.permute.xlu0 0
    %180 = vperm.xlu0 %179, %v171
    %v181 = vpop.permute.xlu0 %180
    %v182 = vlaneseq
    %v183 = vshrl.u32 %v182, 7
    %v184 = vsub.s32 0, %v183
    %v185 = vrot.slane %v181, %v184
    %vm186 = vcmp.lt.s32.totalorder %v169, %v178
    %vm187 = vcmp.lt.s32.totalorder %v169, %v185
    %v192 = vlaneseq
    %v193 = vshrl.u32 %v192, 7
    %v194 = vsub.s32 %v169, %v193
    %v195 = vrot.slane %v157, %v194
    %v196 = vadd.s32 %v169, 4294967288
    %v197 = vlaneseq
    %v198 = vshrl.u32 %v197, 7
    %v199 = vsub.s32 %v196, %v198
    %v200 = vrot.slane %v161, %v199
    %vm201 = vcmask 130112
    %v202 = vsel %vm201, %v200, %v195
    %v203 = vlaneseq
    %v204 = vshrl.u32 %v203, 7
    %v205 = vsub.s32 %v169, %v204
    %v206 = vrot.slane %v164, %v205
    %v207 = vlaneseq
    %v208 = vshrl.u32 %v207, 7
    %v209 = vsub.s32 %v196, %v208
    %v210 = vrot.slane %v167, %v209
    %v211 = vsel %vm201, %v210, %v206
    %v214 = vsel %vm186, %v202, -1000000.0
    %v215 = vsel %vm187, %v211, -1000000.0
    %vm216 = vcmask 73728
    %v217 = vsel %vm216, %v214, -inf
    %218 = vmax.xlane.f32.xlu0 %v217
    %v219 = vpop.xlane.xlu0 %218
    %v220 = vsel %vm216, %v215, -inf
    %221 = vmax.xlane.f32.xlu0 %v220
    %v222 = vpop.xlane.xlu0 %221
    %v223 = vsub.f32 %v214, %v219
    %v224 = vsub.f32 %v215, %v222
    %v225 = vmul.f32 %v223, 1.442695
    %v226 = vpow.pop %v225
    %v227 = vmul.f32 %v224, 1.442695
    %v228 = vpow.pop %v227
    %v229 = vsel %vm216, %v226, 0.0
    %230 = vadd.xlane.f32.xlu0 %v229
    %v231 = vpop.xlane.xlu0 %230
    %v232 = vsel %vm216, %v228, 0.0
    %233 = vadd.xlane.f32.xlu0 %v232
    %v234 = vpop.xlane.xlu0 %233
    %v235 = vrcp.pop %v231
    %v236 = vmul.f32 %v226, %v235
    %v237 = vrcp.pop %v234
    %v238 = vmul.f32 %v228, %v237
    %v239 = vld [vmem:[%s2] sm:$0xf]
    %v240 = vld [vmem:[%s2 + $0x4] sm:$0xf]
    %v241 = vlaneseq
    %v242 = vshrl.u32 %v241, 7
    %v243 = vsub.s32 0, %v242
    %v244 = vrot.slane %v236, %v243
    %v245 = vlaneseq
    %v246 = vshrl.u32 %v245, 7
    %v247 = vsub.s32 0, %v246
    %v248 = vrot.slane %v238, %v247
    %v249 = vmul.f32 %v244, %v239
    %v250 = vmul.f32 %v248, %v240
    %vm251 = vcmask 76800
    %v252 = vsel %vm251, %v249, 0.0
    %253 = vadd.xlane.f32.xlu0 %v252
    %v254 = vpop.xlane.xlu0 %253
    %v255 = vsel %vm251, %v250, 0.0
    %256 = vadd.xlane.f32.xlu0 %v255
    %v257 = vpop.xlane.xlu0 %256
    %v260 = vlaneseq
    %v261 = vshrl.u32 %v260, 7
    %v262 = vsub.s32 %v169, %v261
    %v263 = vrot.slane %v254, %v262
    %v264 = vlaneseq
    %v265 = vshrl.u32 %v264, 7
    %v266 = vsub.s32 %v169, %v265
    %v267 = vrot.slane %v257, %v266
    %vm270 = vcmask 24576
    %271 = vst.msk [vmem:[#allocation2] sm:$0x1] %vm270, %v263
    %272 = vst.msk [vmem:[#allocation2 + $0x1] sm:$0x1] %vm270, %v267
    // Predicated region
    $region22: #{tpu_custom_call.1} parent=1 // pred_check
      _
    $region23: #{tpu_custom_call.1} parent=1 // pred_check_branch
      %274 = sbr.rel (0) target = $region25
    $region24: #{tpu_custom_call.1} parent=1 // pred_region
      %s276 = ssub.s32 32, 32
      %277 = vsyncadd [#allocation3], %s276
      %s278 = sshll.u32 [#allocation2], 4
      %s279 = int_to_ptr.vmem [resolvable:$true] %s278
      %284 = dma.vmem_to_hbm [thread:$0]  %s279, 32, %s5, [#allocation3], 16, 16, 1
    $region25: #{tpu_custom_call.1} parent=1 // pred_fallthru
      _
    // Predicated region
    $region26: #{tpu_custom_call.1} parent=1 // pred_check
      _
    $region27: #{tpu_custom_call.1} parent=1 // pred_check_branch
      %286 = sbr.rel (0) target = $region29
    $region28: #{tpu_custom_call.1} parent=1 // pred_region
      %287 = dma.done [#allocation3], 32
    $region29: #{tpu_custom_call.1} parent=1 // pred_fallthru
      _
    %288 = vsyncpa [#allocation3], 1

</llo_original>
